<compile_context>
chip_gen: v7x
topology: tpu7x:2x2x1
jax: 0.10.0
libtpu: 0.0.40
codegen_flags: <defaults>
</compile_context>

<pallas_src>
import jax
import jax.numpy as jnp
import numpy as np
from jax.experimental import pallas as pl
from jax.experimental.pallas import tpu as pltpu

TAU_S = 2.0
INV_TAU_S = 1.0 / TAU_S          # exact (0.5), so *INV_TAU_S == /TAU_S bit-for-bit

_LANE = 128
_ROW_UNIT = 32                   # rows per in-kernel sub-chunk; multiple of the
                                 # sublane tile for f32 (8), bf16 (16), int8/fp8 (32)


def _make_psp_kernel(r_sub, t_unroll):
    """Build the kernel closure for a given sub-chunk size / time unroll."""

    def kernel(x_ref, o_ref, syn_ref):
        # x_ref / o_ref: (T_CHUNK, R_TILE, 128) dense slabs of one (r, t) tile.
        # syn_ref: (R_TILE, 128) f32 scratch carrying state across T chunks.
        @pl.when(pl.program_id(1) == 0)
        def _init():
            syn_ref[...] = jnp.zeros_like(syn_ref)

        t_chunk = x_ref.shape[0]
        r_tile = x_ref.shape[1]
        n_sub = r_tile // r_sub   # exact by construction in the wrapper

        if n_sub <= 1:
            # Whole tile fits in a few vregs: single time loop.
            def t_body(t, syn):
                x_t = x_ref[t].astype(jnp.float32)
                syn = syn + (x_t - syn) * INV_TAU_S
                o_ref[t] = syn.astype(o_ref.dtype)
                return syn

            syn = jax.lax.fori_loop(0, t_chunk, t_body, syn_ref[...],
                                    unroll=t_unroll)
            syn_ref[...] = syn
        else:
            # Outer loop over independent 32-row sub-chunks keeps the
            # register-carried state small; inner loop over time.
            def r_body(ri, carry):
                r0 = pl.multiple_of(ri * r_sub, r_sub)

                def t_body(t, syn):
                    x_t = x_ref[t, pl.ds(r0, r_sub), :].astype(jnp.float32)
                    syn = syn + (x_t - syn) * INV_TAU_S
                    o_ref[t, pl.ds(r0, r_sub), :] = syn.astype(o_ref.dtype)
                    return syn

                syn = jax.lax.fori_loop(0, t_chunk, t_body,
                                        syn_ref[pl.ds(r0, r_sub), :],
                                        unroll=t_unroll)
                syn_ref[pl.ds(r0, r_sub), :] = syn
                return carry

            jax.lax.fori_loop(0, n_sub, r_body, 0)

    return kernel


def _vmem_budget():
    """Generation-aware (double_buffered_block_budget_bytes, vmem_limit_bytes)."""
    cap = None
    try:
        cap = getattr(pltpu.get_tpu_info(), "vmem_capacity_bytes", None)
    except Exception:
        cap = None
    if cap is None:
        cap = 64 * 1024 * 1024                     # conservative (v7x-sized)
    if cap >= 96 * 1024 * 1024:                    # v5e / v6e: 128 MiB VMEM
        return 48 * 1024 * 1024, 96 * 1024 * 1024
    return 24 * 1024 * 1024, 40 * 1024 * 1024      # v7x: 64 MiB VMEM per TC


def psp_forward(x, *, max_t_chunk=256, max_block_bytes=4 * 1024 * 1024):
    """x: (T, N, C) -> (T, N, C) with syn_t = syn_{t-1} + (x_t - syn_{t-1}) / 2."""
    T, N, C = x.shape
    NC = N * C
    itemsize = jnp.dtype(x.dtype).itemsize
    lane_bytes = _LANE * itemsize

    block_budget, vmem_limit = _vmem_budget()

    # ---- layout: (T, N, C) -> lane/sublane-dense (T, R, 128) ----------------
    nc_lane = pl.cdiv(NC, _LANE) * _LANE
    R = nc_lane // _LANE
    lane_ragged = nc_lane != NC
    x2 = x.reshape(T, NC)
    if lane_ragged:
        # Rare path: NC not a multiple of 128 costs one pad copy (+ final slice).
        x2 = jnp.pad(x2, ((0, 0), (0, nc_lane - NC)))
    x3 = x2.reshape(T, R, _LANE)

    # ---- tile selection ------------------------------------------------------
    # T chunk: capped, and small enough that even a minimum-width (32-row)
    # double-buffered in+out block stays inside the VMEM budget.
    min_rows = min(R, _ROW_UNIT)
    t_budget = max(1, block_budget // (4 * min_rows * lane_bytes))
    t_chunk = max(1, min(T, max_t_chunk, t_budget))

    # R tile: whole of R when small, otherwise a multiple of 32 sized so one
    # block is ~max_block_bytes, double-buffered in+out fits the budget, and at
    # least 2 R blocks remain so the "parallel" axis can shard over v7x's 2 TCs.
    if R <= _ROW_UNIT:
        r_tile = R
    else:
        rows_budget = max(_ROW_UNIT, block_budget // (4 * t_chunk * lane_bytes))
        rows_target = max(_ROW_UNIT, max_block_bytes // (t_chunk * lane_bytes))
        r_tile = min(R, rows_budget, rows_target)
        if R >= 2 * _ROW_UNIT:
            r_tile = min(r_tile, pl.cdiv(R, 2))
        r_tile = max(_ROW_UNIT, (r_tile // _ROW_UNIT) * _ROW_UNIT)
    r_sub = min(_ROW_UNIT, r_tile)
    t_unroll = int(min(8, t_chunk))

    grid = (pl.cdiv(R, r_tile), pl.cdiv(T, t_chunk))

    out = pl.pallas_call(
        _make_psp_kernel(r_sub, t_unroll),
        out_shape=jax.ShapeDtypeStruct((T, R, _LANE), x.dtype),
        grid_spec=pltpu.PrefetchScalarGridSpec(
            num_scalar_prefetch=0,
            grid=grid,
            in_specs=[pl.BlockSpec((t_chunk, r_tile, _LANE),
                                   lambda r, t: (t, r, 0))],
            out_specs=pl.BlockSpec((t_chunk, r_tile, _LANE),
                                   lambda r, t: (t, r, 0)),
            scratch_shapes=[pltpu.VMEM((r_tile, _LANE), jnp.float32)],
        ),
        compiler_params=pltpu.CompilerParams(
            dimension_semantics=("parallel", "arbitrary"),
            vmem_limit_bytes=vmem_limit,
        ),
    )(x3)

    if lane_ragged:
        return out.reshape(T, nc_lane)[:, :NC].reshape(T, N, C)
    return out.reshape(T, N, C)


def psp_reference(x):
    """Pure-JAX reference matching the PyTorch loop."""
    def step(syn, xt):
        syn = syn + (xt - syn) / TAU_S
        return syn, syn

    syn0 = jnp.zeros(x.shape[1:], x.dtype)
    _, syns = jax.lax.scan(step, syn0, x)
    return syns


if __name__ == "__main__":
    # Small shape consistent with the module: (T, N, C).
    T, N, C = 8, 2, 32
    x = jax.random.normal(jax.random.PRNGKey(0), (T, N, C), dtype=jnp.float32)
    out = psp_forward(x)
    jax.block_until_ready(out)
    np.testing.assert_allclose(np.asarray(out), np.asarray(psp_reference(x)),
                               rtol=1e-6, atol=1e-6)

    # Lane-ragged NC (padding path), single tile.
    x2 = jax.random.normal(jax.random.PRNGKey(1), (12, 4, 100), dtype=jnp.float32)
    out2 = psp_forward(x2)
    jax.block_until_ready(out2)
    np.testing.assert_allclose(np.asarray(out2), np.asarray(psp_reference(x2)),
                               rtol=1e-6, atol=1e-6)

    # Multiple R tiles, in-kernel sub-chunk loop, and T chunking with a ragged
    # last chunk (state carried across chunks in the VMEM scratch).
    x3 = jax.random.normal(jax.random.PRNGKey(2), (20, 8, 2048), dtype=jnp.float32)
    out3 = psp_forward(x3, max_t_chunk=8)
    jax.block_until_ready(out3)
    np.testing.assert_allclose(np.asarray(out3), np.asarray(psp_reference(x3)),
                               rtol=1e-6, atol=1e-6)

    print("KERNEL_OK")
</pallas_src>

<mosaic_0001>
module attributes {stable_mosaic.version = 11 : i64} {
  func.func @kernel(%arg0: i32, %arg1: i32, %arg2: memref<8x1x128xf32, #tpu.memory_space<vmem>>, %arg3: memref<8x1x128xf32, #tpu.memory_space<vmem>>, %arg4: memref<1x128xf32, #tpu.memory_space<vmem>>) attributes {dimension_semantics = [#tpu.dimension_semantics<parallel>, #tpu.dimension_semantics<arbitrary>], iteration_bounds = array<i64: 1, 1>, scalar_prefetch = 0 : i64, scratch_operands = 1 : i64, tpu.core_type = #tpu.core_type<tc>, window_params = [{transform_indices = @transform_0, window_bounds = array<i64: 8, 1, 128>}, {transform_indices = @transform_1, window_bounds = array<i64: 8, 1, 128>}]} {
    %c0_i32 = arith.constant 0 : i32
    %0 = arith.cmpi eq, %arg1, %c0_i32 : i32
    %1 = arith.extui %0 : i1 to i32
    %c0_i32_0 = arith.constant 0 : i32
    %2 = arith.cmpi ne, %1, %c0_i32_0 : i32
    scf.if %2 {
      %cst_44 = arith.constant 0.000000e+00 : f32
      %93 = vector.broadcast %cst_44 : f32 to vector<1x128xf32>
      %c0_45 = arith.constant 0 : index
      %c0_46 = arith.constant 0 : index
      %94 = vector.load %arg4[%c0_45, %c0_46] : memref<1x128xf32, #tpu.memory_space<vmem>>, vector<1x128xf32>
      tpu.vector_store %arg4[%c0_45, %c0_46], %93 {strides = array<i32>} : memref<1x128xf32, #tpu.memory_space<vmem>>, vector<1x128xf32>,
    } else {
    }
    %c0 = arith.constant 0 : index
    %c0_1 = arith.constant 0 : index
    %3 = vector.load %arg4[%c0, %c0_1] : memref<1x128xf32, #tpu.memory_space<vmem>>, vector<1x128xf32>
    %c0_i32_2 = arith.constant 0 : i32
    %4 = arith.index_cast %c0_i32_2 : i32 to index
    %c0_3 = arith.constant 0 : index
    %c0_4 = arith.constant 0 : index
    %5 = vector.load %arg2[%4, %c0_3, %c0_4] : memref<8x1x128xf32, #tpu.memory_space<vmem>>, vector<1x1x128xf32>
    %6 = vector.shape_cast %5 : vector<1x1x128xf32> to vector<1x128xf32>
    %7 = arith.subf %6, %3 : vector<1x128xf32>
    %cst = arith.constant 5.000000e-01 : f32
    %8 = vector.broadcast %cst : f32 to vector<1x128xf32>
    %9 = arith.mulf %7, %8 : vector<1x128xf32>
    %10 = arith.addf %3, %9 : vector<1x128xf32>
    %11 = arith.index_cast %c0_i32_2 : i32 to index
    %c0_5 = arith.constant 0 : index
    %c0_6 = arith.constant 0 : index
    %12 = vector.load %arg3[%11, %c0_5, %c0_6] : memref<8x1x128xf32, #tpu.memory_space<vmem>>, vector<1x1x128xf32>
    %13 = vector.shape_cast %12 : vector<1x1x128xf32> to vector<1x128xf32>
    %14 = vector.shape_cast %10 : vector<1x128xf32> to vector<1x1x128xf32>
    tpu.vector_store %arg3[%11, %c0_5, %c0_6], %14 {strides = array<i32>} : memref<8x1x128xf32, #tpu.memory_space<vmem>>, vector<1x1x128xf32>,
    %c1_i32 = arith.constant 1 : i32
    %15 = arith.index_cast %c1_i32 : i32 to index
    %c0_7 = arith.constant 0 : index
    %c0_8 = arith.constant 0 : index
    %16 = vector.load %arg2[%15, %c0_7, %c0_8] : memref<8x1x128xf32, #tpu.memory_space<vmem>>, vector<1x1x128xf32>
    %17 = vector.shape_cast %16 : vector<1x1x128xf32> to vector<1x128xf32>
    %18 = arith.subf %17, %10 : vector<1x128xf32>
    %cst_9 = arith.constant 5.000000e-01 : f32
    %19 = vector.broadcast %cst_9 : f32 to vector<1x128xf32>
    %20 = arith.mulf %18, %19 : vector<1x128xf32>
    %21 = arith.addf %10, %20 : vector<1x128xf32>
    %22 = arith.index_cast %c1_i32 : i32 to index
    %c0_10 = arith.constant 0 : index
    %c0_11 = arith.constant 0 : index
    %23 = vector.load %arg3[%22, %c0_10, %c0_11] : memref<8x1x128xf32, #tpu.memory_space<vmem>>, vector<1x1x128xf32>
    %24 = vector.shape_cast %23 : vector<1x1x128xf32> to vector<1x128xf32>
    %25 = vector.shape_cast %21 : vector<1x128xf32> to vector<1x1x128xf32>
    tpu.vector_store %arg3[%22, %c0_10, %c0_11], %25 {strides = array<i32>} : memref<8x1x128xf32, #tpu.memory_space<vmem>>, vector<1x1x128xf32>,
    %c2_i32 = arith.constant 2 : i32
    %26 = arith.index_cast %c2_i32 : i32 to index
    %c0_12 = arith.constant 0 : index
    %c0_13 = arith.constant 0 : index
    %27 = vector.load %arg2[%26, %c0_12, %c0_13] : memref<8x1x128xf32, #tpu.memory_space<vmem>>, vector<1x1x128xf32>
    %28 = vector.shape_cast %27 : vector<1x1x128xf32> to vector<1x128xf32>
    %29 = arith.subf %28, %21 : vector<1x128xf32>
    %cst_14 = arith.constant 5.000000e-01 : f32
    %30 = vector.broadcast %cst_14 : f32 to vector<1x128xf32>
    %31 = arith.mulf %29, %30 : vector<1x128xf32>
    %32 = arith.addf %21, %31 : vector<1x128xf32>
    %33 = arith.index_cast %c2_i32 : i32 to index
    %c0_15 = arith.constant 0 : index
    %c0_16 = arith.constant 0 : index
    %34 = vector.load %arg3[%33, %c0_15, %c0_16] : memref<8x1x128xf32, #tpu.memory_space<vmem>>, vector<1x1x128xf32>
    %35 = vector.shape_cast %34 : vector<1x1x128xf32> to vector<1x128xf32>
    %36 = vector.shape_cast %32 : vector<1x128xf32> to vector<1x1x128xf32>
    tpu.vector_store %arg3[%33, %c0_15, %c0_16], %36 {strides = array<i32>} : memref<8x1x128xf32, #tpu.memory_space<vmem>>, vector<1x1x128xf32>,
    %c3_i32 = arith.constant 3 : i32
    %37 = arith.index_cast %c3_i32 : i32 to index
    %c0_17 = arith.constant 0 : index
    %c0_18 = arith.constant 0 : index
    %38 = vector.load %arg2[%37, %c0_17, %c0_18] : memref<8x1x128xf32, #tpu.memory_space<vmem>>, vector<1x1x128xf32>
    %39 = vector.shape_cast %38 : vector<1x1x128xf32> to vector<1x128xf32>
    %40 = arith.subf %39, %32 : vector<1x128xf32>
    %cst_19 = arith.constant 5.000000e-01 : f32
    %41 = vector.broadcast %cst_19 : f32 to vector<1x128xf32>
    %42 = arith.mulf %40, %41 : vector<1x128xf32>
    %43 = arith.addf %32, %42 : vector<1x128xf32>
    %44 = arith.index_cast %c3_i32 : i32 to index
    %c0_20 = arith.constant 0 : index
    %c0_21 = arith.constant 0 : index
    %45 = vector.load %arg3[%44, %c0_20, %c0_21] : memref<8x1x128xf32, #tpu.memory_space<vmem>>, vector<1x1x128xf32>
    %46 = vector.shape_cast %45 : vector<1x1x128xf32> to vector<1x128xf32>
    %47 = vector.shape_cast %43 : vector<1x128xf32> to vector<1x1x128xf32>
    tpu.vector_store %arg3[%44, %c0_20, %c0_21], %47 {strides = array<i32>} : memref<8x1x128xf32, #tpu.memory_space<vmem>>, vector<1x1x128xf32>,
    %c4_i32 = arith.constant 4 : i32
    %48 = arith.index_cast %c4_i32 : i32 to index
    %c0_22 = arith.constant 0 : index
    %c0_23 = arith.constant 0 : index
    %49 = vector.load %arg2[%48, %c0_22, %c0_23] : memref<8x1x128xf32, #tpu.memory_space<vmem>>, vector<1x1x128xf32>
    %50 = vector.shape_cast %49 : vector<1x1x128xf32> to vector<1x128xf32>
    %51 = arith.subf %50, %43 : vector<1x128xf32>
    %cst_24 = arith.constant 5.000000e-01 : f32
    %52 = vector.broadcast %cst_24 : f32 to vector<1x128xf32>
    %53 = arith.mulf %51, %52 : vector<1x128xf32>
    %54 = arith.addf %43, %53 : vector<1x128xf32>
    %55 = arith.index_cast %c4_i32 : i32 to index
    %c0_25 = arith.constant 0 : index
    %c0_26 = arith.constant 0 : index
    %56 = vector.load %arg3[%55, %c0_25, %c0_26] : memref<8x1x128xf32, #tpu.memory_space<vmem>>, vector<1x1x128xf32>
    %57 = vector.shape_cast %56 : vector<1x1x128xf32> to vector<1x128xf32>
    %58 = vector.shape_cast %54 : vector<1x128xf32> to vector<1x1x128xf32>
    tpu.vector_store %arg3[%55, %c0_25, %c0_26], %58 {strides = array<i32>} : memref<8x1x128xf32, #tpu.memory_space<vmem>>, vector<1x1x128xf32>,
    %c5_i32 = arith.constant 5 : i32
    %59 = arith.index_cast %c5_i32 : i32 to index
    %c0_27 = arith.constant 0 : index
    %c0_28 = arith.constant 0 : index
    %60 = vector.load %arg2[%59, %c0_27, %c0_28] : memref<8x1x128xf32, #tpu.memory_space<vmem>>, vector<1x1x128xf32>
    %61 = vector.shape_cast %60 : vector<1x1x128xf32> to vector<1x128xf32>
    %62 = arith.subf %61, %54 : vector<1x128xf32>
    %cst_29 = arith.constant 5.000000e-01 : f32
    %63 = vector.broadcast %cst_29 : f32 to vector<1x128xf32>
    %64 = arith.mulf %62, %63 : vector<1x128xf32>
    %65 = arith.addf %54, %64 : vector<1x128xf32>
    %66 = arith.index_cast %c5_i32 : i32 to index
    %c0_30 = arith.constant 0 : index
    %c0_31 = arith.constant 0 : index
    %67 = vector.load %arg3[%66, %c0_30, %c0_31] : memref<8x1x128xf32, #tpu.memory_space<vmem>>, vector<1x1x128xf32>
    %68 = vector.shape_cast %67 : vector<1x1x128xf32> to vector<1x128xf32>
    %69 = vector.shape_cast %65 : vector<1x128xf32> to vector<1x1x128xf32>
    tpu.vector_store %arg3[%66, %c0_30, %c0_31], %69 {strides = array<i32>} : memref<8x1x128xf32, #tpu.memory_space<vmem>>, vector<1x1x128xf32>,
    %c6_i32 = arith.constant 6 : i32
    %70 = arith.index_cast %c6_i32 : i32 to index
    %c0_32 = arith.constant 0 : index
    %c0_33 = arith.constant 0 : index
    %71 = vector.load %arg2[%70, %c0_32, %c0_33] : memref<8x1x128xf32, #tpu.memory_space<vmem>>, vector<1x1x128xf32>
    %72 = vector.shape_cast %71 : vector<1x1x128xf32> to vector<1x128xf32>
    %73 = arith.subf %72, %65 : vector<1x128xf32>
    %cst_34 = arith.constant 5.000000e-01 : f32
    %74 = vector.broadcast %cst_34 : f32 to vector<1x128xf32>
    %75 = arith.mulf %73, %74 : vector<1x128xf32>
    %76 = arith.addf %65, %75 : vector<1x128xf32>
    %77 = arith.index_cast %c6_i32 : i32 to index
    %c0_35 = arith.constant 0 : index
    %c0_36 = arith.constant 0 : index
    %78 = vector.load %arg3[%77, %c0_35, %c0_36] : memref<8x1x128xf32, #tpu.memory_space<vmem>>, vector<1x1x128xf32>
    %79 = vector.shape_cast %78 : vector<1x1x128xf32> to vector<1x128xf32>
    %80 = vector.shape_cast %76 : vector<1x128xf32> to vector<1x1x128xf32>
    tpu.vector_store %arg3[%77, %c0_35, %c0_36], %80 {strides = array<i32>} : memref<8x1x128xf32, #tpu.memory_space<vmem>>, vector<1x1x128xf32>,
    %c7_i32 = arith.constant 7 : i32
    %81 = arith.index_cast %c7_i32 : i32 to index
    %c0_37 = arith.constant 0 : index
    %c0_38 = arith.constant 0 : index
    %82 = vector.load %arg2[%81, %c0_37, %c0_38] : memref<8x1x128xf32, #tpu.memory_space<vmem>>, vector<1x1x128xf32>
    %83 = vector.shape_cast %82 : vector<1x1x128xf32> to vector<1x128xf32>
    %84 = arith.subf %83, %76 : vector<1x128xf32>
    %cst_39 = arith.constant 5.000000e-01 : f32
    %85 = vector.broadcast %cst_39 : f32 to vector<1x128xf32>
    %86 = arith.mulf %84, %85 : vector<1x128xf32>
    %87 = arith.addf %76, %86 : vector<1x128xf32>
    %88 = arith.index_cast %c7_i32 : i32 to index
    %c0_40 = arith.constant 0 : index
    %c0_41 = arith.constant 0 : index
    %89 = vector.load %arg3[%88, %c0_40, %c0_41] : memref<8x1x128xf32, #tpu.memory_space<vmem>>, vector<1x1x128xf32>
    %90 = vector.shape_cast %89 : vector<1x1x128xf32> to vector<1x128xf32>
    %91 = vector.shape_cast %87 : vector<1x128xf32> to vector<1x1x128xf32>
    tpu.vector_store %arg3[%88, %c0_40, %c0_41], %91 {strides = array<i32>} : memref<8x1x128xf32, #tpu.memory_space<vmem>>, vector<1x1x128xf32>,
    %c8_i32 = arith.constant 8 : i32
    %c0_42 = arith.constant 0 : index
    %c0_43 = arith.constant 0 : index
    %92 = vector.load %arg4[%c0_42, %c0_43] : memref<1x128xf32, #tpu.memory_space<vmem>>, vector<1x128xf32>
    tpu.vector_store %arg4[%c0_42, %c0_43], %87 {strides = array<i32>} : memref<1x128xf32, #tpu.memory_space<vmem>>, vector<1x128xf32>,
    return
  }
  func.func @transform_0(%arg0: i32, %arg1: i32) -> (i32, i32, i32) {
    %c0_i32 = arith.constant 0 : i32
    %c0_i32_0 = arith.constant 0 : i32
    return %arg1, %arg0, %c0_i32 : i32, i32, i32
  }
  func.func @transform_1(%arg0: i32, %arg1: i32) -> (i32, i32, i32) {
    %c0_i32 = arith.constant 0 : i32
    %c0_i32_0 = arith.constant 0 : i32
    return %arg1, %arg0, %c0_i32 : i32, i32, i32
  }
}

</mosaic_0001>

<llo_original>
// kernel: tpu_custom_call.1
$region0: #{tpu_custom_call.1}
  #allocation0 [shape = 'u32[]', space=smem, size = 0x4, offset = 0x4, fixed_abs, tag = 'smem constant byte address 0x4 - core index']
  #allocation1 [shape = 'u32[144,128]{1,0:T(1,128)}', space=vmem, size = 0x12000, scoped, tag = 'internal scratch']
  #allocation2 [shape = 'f32[1,128]{1,0:T(1,128)}', space=vmem, size = 0x200, scoped, tag = 'scratch operand']
  %s0 = inlined_call_operand.hbm [shape: f32[8,1,128], index: 0, kind: input, shape index: {}]
  %s1 = inlined_call_operand.hbm [shape: f32[8,1,128], index: 1, kind: output, shape index: {}]
  %s2 = sld [smem:[#allocation0]]
  $region22: #{tpu_custom_call.1} parent=0
    _
  %s4 = ssub.s32 1, %s2
  %s5 = scalar_select 0, %s4, %s2
  $region1: #{tpu_custom_call.1} parent=0
    #allocation3 [shape = 'u8[4096]{0}', space=vmem, size = 0x1000, scoped, tag = 'input window, operand 0, single buffered']
    #allocation4 [shape = 's32[1]{0}', space=sflag, size = 0x4, scoped, tag = 'scoped memory for tpu_custom_call.1']
    #allocation5 [shape = 's32[1]{0}', space=sflag, size = 0x4, scoped, tag = 'scoped memory for tpu_custom_call.1']
    #allocation6 [shape = 'u8[4096]{0}', space=vmem, size = 0x1000, scoped, tag = 'output window, operand 0, single buffered']
    %6 = vsyncpa [#allocation4], 0
    %7 = vsyncpa [#allocation5], 0
    // Predicated region
    $region2: #{tpu_custom_call.1} parent=1 // pred_check
      _
    $region3: #{tpu_custom_call.1} parent=1 // pred_check_branch
      %9 = sbr.rel (0) target = $region5
    $region4: #{tpu_custom_call.1} parent=1 // pred_region
      %s11 = ssub.s32 128, 128
      %12 = vsyncadd [#allocation4], %s11
      %s13 = sshll.u32 [#allocation3], 4
      %s14 = int_to_ptr.vmem [resolvable:$true] %s13
      %19 = dma.hbm_to_vmem [thread:$0]  %s0, 128, %s14, [#allocation4], 16, 16, 1
    $region5: #{tpu_custom_call.1} parent=1 // pred_fallthru
      _
    // Predicated region
    $region6: #{tpu_custom_call.1} parent=1 // pred_check
      _
    $region7: #{tpu_custom_call.1} parent=1 // pred_check_branch
      %21 = sbr.rel (0) target = $region9
    $region8: #{tpu_custom_call.1} parent=1 // pred_region
      %22 = dma.done [#allocation4], 128
    $region9: #{tpu_custom_call.1} parent=1 // pred_fallthru
      _
    %p23 = scmp.eq.s32.totalorder 0, 0
    // Predicated region
    $region10: #{tpu_custom_call.1} parent=1 // pred_check
      %p24 = pneg %p23
    $region11: #{tpu_custom_call.1} parent=1 // pred_check_branch
      %26 = sbr.rel (%p24) target = $region13
    $region12: #{tpu_custom_call.1} parent=1 // pred_region
      %27 = vst [vmem:[#allocation2] sm:$0x1] 0.0
    $region13: #{tpu_custom_call.1} parent=1 // pred_fallthru
      _
    %v28 = vld [vmem:[#allocation2] sm:$0x1]
    %v29 = vld [vmem:[#allocation3] sm:$0x1]
    %v30 = vsub.f32 %v29, %v28
    %v31 = vmul.f32 %v30, 0.5
    %v32 = vadd.f32 %v28, %v31
    %33 = vst [vmem:[#allocation6] sm:$0x1] %v32
    %s34 = scalar_lea.vmem [#allocation3], 1
    %v35 = vld [vmem:[%s34] sm:$0x1]
    %v36 = vsub.f32 %v35, %v32
    %v37 = vmul.f32 %v36, 0.5
    %v38 = vadd.f32 %v32, %v37
    %s39 = scalar_lea.vmem [#allocation6], 1
    %40 = vst [vmem:[%s39] sm:$0x1] %v38
    %s41 = scalar_lea.vmem [#allocation3], 2
    %v42 = vld [vmem:[%s41] sm:$0x1]
    %v43 = vsub.f32 %v42, %v38
    %v44 = vmul.f32 %v43, 0.5
    %v45 = vadd.f32 %v38, %v44
    %s46 = scalar_lea.vmem [#allocation6], 2
    %47 = vst [vmem:[%s46] sm:$0x1] %v45
    %s48 = scalar_lea.vmem [#allocation3], 3
    %v49 = vld [vmem:[%s48] sm:$0x1]
    %v50 = vsub.f32 %v49, %v45
    %v51 = vmul.f32 %v50, 0.5
    %v52 = vadd.f32 %v45, %v51
    %s53 = scalar_lea.vmem [#allocation6], 3
    %54 = vst [vmem:[%s53] sm:$0x1] %v52
    %s55 = scalar_lea.vmem [#allocation3], 4
    %v56 = vld [vmem:[%s55] sm:$0x1]
    %v57 = vsub.f32 %v56, %v52
    %v58 = vmul.f32 %v57, 0.5
    %v59 = vadd.f32 %v52, %v58
    %s60 = scalar_lea.vmem [#allocation6], 4
    %61 = vst [vmem:[%s60] sm:$0x1] %v59
    %s62 = scalar_lea.vmem [#allocation3], 5
    %v63 = vld [vmem:[%s62] sm:$0x1]
    %v64 = vsub.f32 %v63, %v59
    %v65 = vmul.f32 %v64, 0.5
    %v66 = vadd.f32 %v59, %v65
    %s67 = scalar_lea.vmem [#allocation6], 5
    %68 = vst [vmem:[%s67] sm:$0x1] %v66
    %s69 = scalar_lea.vmem [#allocation3], 6
    %v70 = vld [vmem:[%s69] sm:$0x1]
    %v71 = vsub.f32 %v70, %v66
    %v72 = vmul.f32 %v71, 0.5
    %v73 = vadd.f32 %v66, %v72
    %s74 = scalar_lea.vmem [#allocation6], 6
    %75 = vst [vmem:[%s74] sm:$0x1] %v73
    %s76 = scalar_lea.vmem [#allocation3], 7
    %v77 = vld [vmem:[%s76] sm:$0x1]
    %v78 = vsub.f32 %v77, %v73
    %v79 = vmul.f32 %v78, 0.5
    %v80 = vadd.f32 %v73, %v79
    %s81 = scalar_lea.vmem [#allocation6], 7
    %82 = vst [vmem:[%s81] sm:$0x1] %v80
    %83 = vst [vmem:[#allocation2] sm:$0x1] %v80
    // Predicated region
    $region14: #{tpu_custom_call.1} parent=1 // pred_check
      _
    $region15: #{tpu_custom_call.1} parent=1 // pred_check_branch
      %85 = sbr.rel (0) target = $region17
    $region16: #{tpu_custom_call.1} parent=1 // pred_region
      %s87 = ssub.s32 128, 128
      %88 = vsyncadd [#allocation5], %s87
      %s89 = sshll.u32 [#allocation6], 4
      %s90 = int_to_ptr.vmem [resolvable:$true] %s89
      %95 = dma.vmem_to_hbm [thread:$0]  %s90, 128, %s1, [#allocation5], 16, 16, 1
    $region17: #{tpu_custom_call.1} parent=1 // pred_fallthru
      _
    // Predicated region
    $region18: #{tpu_custom_call.1} parent=1 // pred_check
      _
    $region19: #{tpu_custom_call.1} parent=1 // pred_check_branch
      %97 = sbr.rel (0) target = $region21
    $region20: #{tpu_custom_call.1} parent=1 // pred_region
      %98 = dma.done [#allocation5], 128
    $region21: #{tpu_custom_call.1} parent=1 // pred_fallthru
      _
    %99 = vsyncpa [#allocation4], 1
    %100 = vsyncpa [#allocation5], 1

</llo_original>
